<compile_context>
chip_gen: v6e
topology: v6e:2x2x1
jax: 0.10.0
libtpu: 0.0.40
codegen_flags: <defaults>
</compile_context>

<pallas_src>
import functools
import math

import jax
import jax.numpy as jnp
from jax.experimental import pallas as pl
from jax.experimental.pallas import tpu as pltpu


# ---------------------------------------------------------------------------
# Small-S kernel (S <= 128): whole sequence per grid step, batch folded into
# the MXU M dimension via a block-diagonal score matmul.
# ---------------------------------------------------------------------------
def _small_s_attn_kernel(q_ref, k_ref, v_ref, o_ref, *, scale, bb, s, d,
                         compute_dtype):
    # Scale folded into q (O(S*D) multiplies instead of an O(S^2) divide),
    # then cast both MXU operands to bf16; accumulation stays f32.
    q = (q_ref[...].astype(jnp.float32) * scale).astype(compute_dtype)
    k = k_ref[...].astype(compute_dtype)
    v = v_ref[...].astype(compute_dtype)

    # Fold batch into M: one (bb*s, d) x (bb*s, d)^T matmul instead of bb tiny
    # M=s matmuls (MXU drain latency dominates the batched form at small S).
    q2 = q.reshape(bb * s, d)
    k2 = k.reshape(bb * s, d)
    v2 = v.reshape(bb * s, d)

    # Contract last dims of both operands (no explicit transpose of k).
    scores = jax.lax.dot_general(
        q2, k2, (((1,), (1,)), ((), ())),
        preferred_element_type=jnp.float32)               # (bb*s, bb*s)

    if bb > 1:
        # Keep the fold block-diagonal: mask cross-batch scores to -inf.
        row_b = jax.lax.broadcasted_iota(jnp.int32, scores.shape, 0) // s
        col_b = jax.lax.broadcasted_iota(jnp.int32, scores.shape, 1) // s
        scores = jnp.where(row_b == col_b, scores, -jnp.inf)

    m = jnp.max(scores, axis=-1, keepdims=True)
    p = jnp.exp(scores - m)
    l = jnp.sum(p, axis=-1, keepdims=True)

    # dropout(softmax) is the identity in eval mode.
    out = jax.lax.dot_general(
        p.astype(compute_dtype), v2, (((1,), (0,)), ((), ())),
        preferred_element_type=jnp.float32)               # (bb*s, d)
    out = out * pl.reciprocal(l, approx=True)             # EUP slot, ~free
    o_ref[...] = out.reshape(bb, s, d).astype(o_ref.dtype)


# ---------------------------------------------------------------------------
# Flash kernel (S > 128): online softmax tiled over the KV axis.
# ---------------------------------------------------------------------------
def _flash_attn_kernel(q_ref, k_ref, v_ref, o_ref, m_sc, l_sc, acc_sc, *,
                       scale, tk, s_kv, compute_dtype, mask_kv):
    kv = pl.program_id(2)

    @pl.when(kv == 0)
    def _():
        m_sc[...] = jnp.full_like(m_sc, -jnp.inf)
        l_sc[...] = jnp.zeros_like(l_sc)
        acc_sc[...] = jnp.zeros_like(acc_sc)

    # Fold scale into q; both MXU operands in bf16, f32 accumulation.
    q = (q_ref[...].astype(jnp.float32) * scale).astype(compute_dtype)
    k = k_ref[...]
    v = v_ref[...]

    # Contract the last dims of both operands -> no XLU transpose of k.
    s = jnp.einsum("bqd,bkd->bqk", q, k.astype(compute_dtype),
                   preferred_element_type=jnp.float32)    # (1, tq, tk)

    if mask_kv:
        # Mask padded key columns (ragged tail) to -inf.
        col = jax.lax.broadcasted_iota(jnp.int32, s.shape, 2) + kv * tk
        s = jnp.where(col < s_kv, s, -jnp.inf)

    m_prev = m_sc[...]
    m_new = jnp.maximum(m_prev, jnp.max(s, axis=-1, keepdims=True))
    alpha = jnp.exp(m_prev - m_new)
    p = jnp.exp(s - m_new)

    l_sc[...] = alpha * l_sc[...] + jnp.sum(p, axis=-1, keepdims=True)
    acc_sc[...] = alpha * acc_sc[...] + jnp.einsum(
        "bqk,bkd->bqd", p.astype(compute_dtype), v.astype(compute_dtype),
        preferred_element_type=jnp.float32)
    m_sc[...] = m_new

    @pl.when(kv == pl.num_programs(2) - 1)
    def _():
        # dropout(softmax) is the identity in eval mode.
        inv_l = pl.reciprocal(l_sc[...], approx=True)
        o_ref[...] = (acc_sc[...] * inv_l).astype(o_ref.dtype)


# ---------------------------------------------------------------------------
# Wrapper
# ---------------------------------------------------------------------------
def _pick_bb(batch, seq, d):
    """Batch-per-step for the small-S path.

    Fill the MXU M dimension up to ~512 folded rows, keep per-step blocks well
    inside VMEM, and keep the batch grid axis extent >= 2 so both v7x
    TensorCores get work.
    """
    row_cap = max(1, 512 // max(seq, 1))
    vmem_cap = max(1, (4 << 20) // max(1, seq * d * 4))
    cap = max(1, min(row_cap, vmem_cap, batch))
    bb = 1
    for cand in range(1, cap + 1):
        if batch % cand == 0:
            bb = cand
    if batch >= 2 and batch // bb < 2:
        for cand in range(bb - 1, 0, -1):
            if batch % cand == 0 and batch // cand >= 2:
                bb = cand
                break
    return bb


def sfdp_attention(q, k, v, inv_scale_factor, dropout_p=0.0, *,
                   compute_dtype=jnp.bfloat16):
    """q, k, v: [B, S, D]. Returns softmax(q @ k^T / inv_scale) @ v (eval)."""
    del dropout_p  # eval-mode dropout is the identity
    B, S, D = q.shape
    # Static Python scalar -> closure constant (a traced scale is unsupported).
    scale = 1.0 / float(inv_scale_factor)
    dsize = jnp.dtype(q.dtype).itemsize

    if S <= 128:
        bb = _pick_bb(B, S, D)
        kernel = functools.partial(
            _small_s_attn_kernel, scale=scale, bb=bb, s=S, d=D,
            compute_dtype=compute_dtype)
        cost = pl.CostEstimate(
            flops=4 * B * S * S * D,
            transcendentals=B * S * S,
            bytes_accessed=4 * B * S * D * dsize)
        return pl.pallas_call(
            kernel,
            out_shape=jax.ShapeDtypeStruct((B, S, D), q.dtype),
            grid_spec=pltpu.PrefetchScalarGridSpec(
                num_scalar_prefetch=0,
                grid=(B // bb,),
                in_specs=[
                    pl.BlockSpec((bb, S, D), lambda b: (b, 0, 0)),
                    pl.BlockSpec((bb, S, D), lambda b: (b, 0, 0)),
                    pl.BlockSpec((bb, S, D), lambda b: (b, 0, 0)),
                ],
                out_specs=pl.BlockSpec((bb, S, D), lambda b: (b, 0, 0)),
            ),
            compiler_params=pltpu.CompilerParams(
                dimension_semantics=("parallel",),
                vmem_limit_bytes=32 * 1024 * 1024),
            cost_estimate=cost,
        )(q, k, v)

    # ---- flash path: S > 128 ---------------------------------------------
    tq = 512 if S >= 512 else 256     # big q tile: K/V re-stream ~ S/tq
    tk = 256                          # fill the 256-wide v6e/v7x MXU
    sq_pad = pl.cdiv(S, tq) * tq
    sk_pad = pl.cdiv(S, tk) * tk

    q_p = q if sq_pad == S else jnp.pad(q, ((0, 0), (0, sq_pad - S), (0, 0)))
    k_p = k if sk_pad == S else jnp.pad(k, ((0, 0), (0, sk_pad - S), (0, 0)))
    v_p = v if sk_pad == S else jnp.pad(v, ((0, 0), (0, sk_pad - S), (0, 0)))

    kv_steps = sk_pad // tk
    kv_kwargs = {"pipeline_mode": pl.Buffered(3)} if kv_steps >= 3 else {}

    kernel = functools.partial(
        _flash_attn_kernel, scale=scale, tk=tk, s_kv=S,
        compute_dtype=compute_dtype, mask_kv=(sk_pad != S))

    # Include the K/V re-stream factor (~ one full pass per query tile).
    cost = pl.CostEstimate(
        flops=4 * B * S * S * D,
        transcendentals=B * S * S,
        bytes_accessed=int(B * S * D * dsize * (2 * pl.cdiv(S, tq) + 2)))

    out = pl.pallas_call(
        kernel,
        out_shape=jax.ShapeDtypeStruct((B, sq_pad, D), q.dtype),
        grid_spec=pltpu.PrefetchScalarGridSpec(
            num_scalar_prefetch=0,
            grid=(B, sq_pad // tq, kv_steps),
            in_specs=[
                pl.BlockSpec((1, tq, D), lambda b, qi, ki: (b, qi, 0)),
                pl.BlockSpec((1, tk, D), lambda b, qi, ki: (b, ki, 0),
                             **kv_kwargs),
                pl.BlockSpec((1, tk, D), lambda b, qi, ki: (b, ki, 0),
                             **kv_kwargs),
            ],
            out_specs=pl.BlockSpec((1, tq, D), lambda b, qi, ki: (b, qi, 0)),
            scratch_shapes=[
                pltpu.VMEM((1, tq, 1), jnp.float32),   # running max m
                pltpu.VMEM((1, tq, 1), jnp.float32),   # running denom l
                pltpu.VMEM((1, tq, D), jnp.float32),   # output accumulator
            ],
        ),
        compiler_params=pltpu.CompilerParams(
            dimension_semantics=("parallel", "parallel", "arbitrary"),
            vmem_limit_bytes=32 * 1024 * 1024),
        cost_estimate=cost,
    )(q_p, k_p, v_p)

    return out if sq_pad == S else out[:, :S, :]


def _reference(q, k, v, inv_scale_factor):
    s = jnp.einsum("bqd,bkd->bqk", q.astype(jnp.float32),
                   k.astype(jnp.float32)) / inv_scale_factor
    p = jax.nn.softmax(s, axis=-1)
    return jnp.einsum("bqk,bkd->bqd", p, v.astype(jnp.float32))


if __name__ == "__main__":
    key = jax.random.PRNGKey(0)
    k1, k2, k3, k4, k5, k6 = jax.random.split(key, 6)

    dropout_p = 0.1  # eval-mode dropout == identity

    # Primary shape implied by the module (single-head attention, tiny).
    B, S, D = 2, 8, 32
    q = jax.random.normal(k1, (B, S, D), dtype=jnp.float32)
    k = jax.random.normal(k2, (B, S, D), dtype=jnp.float32)
    v = jax.random.normal(k3, (B, S, D), dtype=jnp.float32)
    inv_scale = float(math.sqrt(D))

    out = jax.block_until_ready(sfdp_attention(q, k, v, inv_scale, dropout_p))
    ref = _reference(q, k, v, inv_scale)
    assert out.shape == (B, S, D)
    # bf16 MXU operands + approx reciprocal -> loose (flash-attention-typical)
    # tolerance vs. the f32 reference.
    assert jnp.allclose(out, ref, atol=3e-2, rtol=3e-2), (
        "small-S path mismatch: max |err| = %g"
        % float(jnp.max(jnp.abs(out - ref))))

    # Secondary: exercise the flash (S > 128) path incl. ragged-tail masking.
    B2, S2, D2 = 2, 320, 32
    q2 = jax.random.normal(k4, (B2, S2, D2), dtype=jnp.float32)
    k2_ = jax.random.normal(k5, (B2, S2, D2), dtype=jnp.float32)
    v2 = jax.random.normal(k6, (B2, S2, D2), dtype=jnp.float32)
    inv_scale2 = float(math.sqrt(D2))

    out2 = jax.block_until_ready(
        sfdp_attention(q2, k2_, v2, inv_scale2, dropout_p))
    ref2 = _reference(q2, k2_, v2, inv_scale2)
    assert out2.shape == (B2, S2, D2)
    assert jnp.allclose(out2, ref2, atol=3e-2, rtol=3e-2), (
        "flash path mismatch: max |err| = %g"
        % float(jnp.max(jnp.abs(out2 - ref2))))

    print("KERNEL_OK")
</pallas_src>

<mosaic_0001>
module attributes {stable_mosaic.version = 11 : i64} {
  func.func @_small_s_attn_kernel(%arg0: i32, %arg1: memref<1x8x32xf32, #tpu.memory_space<vmem>>, %arg2: memref<1x8x32xf32, #tpu.memory_space<vmem>>, %arg3: memref<1x8x32xf32, #tpu.memory_space<vmem>>, %arg4: memref<1x8x32xf32, #tpu.memory_space<vmem>>) attributes {dimension_semantics = [#tpu.dimension_semantics<parallel>], iteration_bounds = array<i64: 2>, scalar_prefetch = 0 : i64, scratch_operands = 0 : i64, tpu.core_type = #tpu.core_type<tc>, window_params = [{transform_indices = @transform_0, window_bounds = array<i64: 1, 8, 32>}, {transform_indices = @transform_1, window_bounds = array<i64: 1, 8, 32>}, {transform_indices = @transform_2, window_bounds = array<i64: 1, 8, 32>}, {transform_indices = @transform_3, window_bounds = array<i64: 1, 8, 32>}]} {
    %c0 = arith.constant 0 : index
    %c0_0 = arith.constant 0 : index
    %c0_1 = arith.constant 0 : index
    %0 = vector.load %arg1[%c0, %c0_0, %c0_1] : memref<1x8x32xf32, #tpu.memory_space<vmem>>, vector<1x8x32xf32>
    %cst = arith.constant 0.176776692 : f32
    %1 = vector.broadcast %cst : f32 to vector<1x8x32xf32>
    %2 = arith.mulf %0, %1 : vector<1x8x32xf32>
    %3 = arith.truncf %2 : vector<1x8x32xf32> to vector<1x8x32xbf16>
    %c0_2 = arith.constant 0 : index
    %c0_3 = arith.constant 0 : index
    %c0_4 = arith.constant 0 : index
    %4 = vector.load %arg2[%c0_2, %c0_3, %c0_4] : memref<1x8x32xf32, #tpu.memory_space<vmem>>, vector<1x8x32xf32>
    %5 = arith.truncf %4 : vector<1x8x32xf32> to vector<1x8x32xbf16>
    %c0_5 = arith.constant 0 : index
    %c0_6 = arith.constant 0 : index
    %c0_7 = arith.constant 0 : index
    %6 = vector.load %arg3[%c0_5, %c0_6, %c0_7] : memref<1x8x32xf32, #tpu.memory_space<vmem>>, vector<1x8x32xf32>
    %7 = arith.truncf %6 : vector<1x8x32xf32> to vector<1x8x32xbf16>
    %8 = vector.shape_cast %3 : vector<1x8x32xbf16> to vector<8x32xbf16>
    %9 = vector.shape_cast %5 : vector<1x8x32xbf16> to vector<8x32xbf16>
    %10 = vector.shape_cast %7 : vector<1x8x32xbf16> to vector<8x32xbf16>
    %cst_8 = arith.constant dense<0.000000e+00> : vector<8x8xf32>
    %11 = tpu.matmul %8, %9, %cst_8 {dimension_numbers = #tpu.dot_dimension_numbers<[1], [1], [0], [0], [0, 0, 1, 0], [], []>} : vector<8x32xbf16>, vector<8x32xbf16>, vector<8x8xf32> -> vector<8x8xf32>
    %cst_9 = arith.constant dense<0xFF800000> : vector<8xf32>
    %12 = vector.multi_reduction <maximumf>, %11, %cst_9 [1] : vector<8x8xf32> to vector<8xf32>
    %13 = vector.shape_cast %12 : vector<8xf32> to vector<8x1xf32>
    %14 = vector.broadcast %13 : vector<8x1xf32> to vector<8x8xf32>
    %15 = arith.subf %11, %14 : vector<8x8xf32>
    %16 = math.exp %15 : vector<8x8xf32>
    %cst_10 = arith.constant dense<0.000000e+00> : vector<8xf32>
    %17 = vector.multi_reduction <add>, %16, %cst_10 [1] : vector<8x8xf32> to vector<8xf32>
    %18 = vector.shape_cast %17 : vector<8xf32> to vector<8x1xf32>
    %19 = arith.truncf %16 : vector<8x8xf32> to vector<8x8xbf16>
    %cst_11 = arith.constant dense<0.000000e+00> : vector<8x32xf32>
    %20 = tpu.matmul %19, %10, %cst_11 {dimension_numbers = #tpu.dot_dimension_numbers<[1], [0], [0], [1], [0, 0, 1, 1], [], []>} : vector<8x8xbf16>, vector<8x32xbf16>, vector<8x32xf32> -> vector<8x32xf32>
    %21 = tpu.reciprocal %18 {approx = true} : vector<8x1xf32> -> vector<8x1xf32>
    %22 = vector.broadcast %21 : vector<8x1xf32> to vector<8x32xf32>
    %23 = arith.mulf %20, %22 : vector<8x32xf32>
    %24 = vector.shape_cast %23 : vector<8x32xf32> to vector<1x8x32xf32>
    %c0_12 = arith.constant 0 : index
    %c0_13 = arith.constant 0 : index
    %c0_14 = arith.constant 0 : index
    %25 = vector.load %arg4[%c0_12, %c0_13, %c0_14] : memref<1x8x32xf32, #tpu.memory_space<vmem>>, vector<1x8x32xf32>
    tpu.vector_store %arg4[%c0_12, %c0_13, %c0_14], %24 {strides = array<i32>} : memref<1x8x32xf32, #tpu.memory_space<vmem>>, vector<1x8x32xf32>,
    return
  }
  func.func @transform_0(%arg0: i32) -> (i32, i32, i32) {
    %c0_i32 = arith.constant 0 : i32
    %c0_i32_0 = arith.constant 0 : i32
    %c0_i32_1 = arith.constant 0 : i32
    return %arg0, %c0_i32, %c0_i32_0 : i32, i32, i32
  }
  func.func @transform_1(%arg0: i32) -> (i32, i32, i32) {
    %c0_i32 = arith.constant 0 : i32
    %c0_i32_0 = arith.constant 0 : i32
    %c0_i32_1 = arith.constant 0 : i32
    return %arg0, %c0_i32, %c0_i32_0 : i32, i32, i32
  }
  func.func @transform_2(%arg0: i32) -> (i32, i32, i32) {
    %c0_i32 = arith.constant 0 : i32
    %c0_i32_0 = arith.constant 0 : i32
    %c0_i32_1 = arith.constant 0 : i32
    return %arg0, %c0_i32, %c0_i32_0 : i32, i32, i32
  }
  func.func @transform_3(%arg0: i32) -> (i32, i32, i32) {
    %c0_i32 = arith.constant 0 : i32
    %c0_i32_0 = arith.constant 0 : i32
    %c0_i32_1 = arith.constant 0 : i32
    return %arg0, %c0_i32, %c0_i32_0 : i32, i32, i32
  }
}

</mosaic_0001>

<llo_original>
// kernel: tpu_custom_call.1
$region0: #{tpu_custom_call.1}
  #allocation0 [shape = 'u32[]', space=smem, size = 0x4, offset = 0x4, fixed_abs, tag = 'smem constant byte address 0x4 - core index']
  #allocation1 [shape = 'u32[144,128]{1,0:T(1,128)}', space=vmem, size = 0x12000, scoped, tag = 'internal scratch']
  %s0 = inlined_call_operand.hbm [shape: f32[2,8,32], index: 0, kind: input, shape index: {}]
  %s1 = inlined_call_operand.hbm [shape: f32[2,8,32], index: 1, kind: input, shape index: {}]
  %s2 = inlined_call_operand.hbm [shape: f32[2,8,32], index: 2, kind: input, shape index: {}]
  %s3 = inlined_call_operand.hbm [shape: f32[2,8,32], index: 3, kind: output, shape index: {}]
  %s4 = sld [smem:[#allocation0]]
  $region57: #{tpu_custom_call.1} parent=0
    _
  %s6 = ssub.s32 1, %s4
  %s7 = scalar_select 0, %s6, %s4
  $region1: #{tpu_custom_call.1} parent=0
    #allocation2 [shape = 'u8[8192]{0}', space=vmem, size = 0x2000, scoped, tag = 'input window, operand 0']
    #allocation3 [shape = 's32[2]{0}', space=sflag, size = 0x8, scoped, tag = 'scoped memory for tpu_custom_call.1']
    #allocation4 [shape = 's32[2]{0}', space=sflag, size = 0x8, scoped, tag = 'scoped memory for tpu_custom_call.1']
    #allocation5 [shape = 'u8[8192]{0}', space=vmem, size = 0x2000, scoped, tag = 'input window, operand 1']
    #allocation6 [shape = 's32[2]{0}', space=sflag, size = 0x8, scoped, tag = 'scoped memory for tpu_custom_call.1']
    #allocation7 [shape = 'u8[8192]{0}', space=vmem, size = 0x2000, scoped, tag = 'input window, operand 2']
    #allocation8 [shape = 'u8[8192]{0}', space=vmem, size = 0x2000, scoped, tag = 'output window, operand 0']
    %8 = vsyncpa [#allocation3], 0
    %s9 = scalar_lea.sflag [#allocation3], 1
    %10 = vsyncpa %s9, 0
    %11 = vsyncpa [#allocation6], 0
    %s12 = scalar_lea.sflag [#allocation6], 1
    %13 = vsyncpa %s12, 0
    %14 = vsyncpa [#allocation4], 0
    %s15 = scalar_lea.sflag [#allocation4], 1
    %16 = vsyncpa %s15, 0
    loop: start=0, step=1, limit=4
    $region2: #{tpu_custom_call.1} parent=1 // loop_pre_header
      _
    $region3: #{tpu_custom_call.1} parent=1 // loop_header
      %s18 = sphi 0, %s22
      %p19 = scmp.ge.s32.totalorder %s18, 4
      %s28 = sphi 0, %s30
      %s31 = sphi 0, %s28
      %s32 = sphi 0, %s31
      %s48 = sphi 0, %s32
      %s54 = sphi 0, %s56
      %s57 = sphi 0, %s54
      %s58 = sphi 0, %s57
      %s74 = sphi 0, %s58
      %s80 = sphi 0, %s82
      %s83 = sphi 0, %s80
      %s84 = sphi 0, %s83
      %s100 = sphi 0, %s84
      %s106 = sphi 0, %s108
      %s109 = sphi 0, %s106
      %s110 = sphi 0, %s109
      %s126 = sphi 0, %s110
    $region4: #{tpu_custom_call.1} parent=1 // loop_header_branch
      %21 = sbr.rel (%p19) target = $region8
    $region5: #{tpu_custom_call.1} parent=1 // loop_body
      %s23 = ssub.s32 %s18, 1
      %s24 = ssub.s32 %s18, 2
      %s25 = sadd.s32 %s18, 1
      %s26 = ssub.s32 %s18, %s25
      %p27 = scmp.eq.s32.totalorder %s26, 0
      %s29 = sadd.s32 %s28, 1
      %s30 = scalar_select %p27, %s28, %s29
      %p33 = pneg %p27
      %p34 = scmp.eq.s32.totalorder %s18, 1
      %p35 = por %p33, %p34
      %p36 = scmp.ne.s32.totalorder %s28, %s31
      %p37 = scmp.eq.s32.totalorder %s18, 0
      %p38 = por %p36, %p37
      %p39 = scmp.ne.s32.totalorder %s28, %s31
      %p40 = scmp.eq.s32.totalorder %s23, 1
      %p41 = por %p39, %p40
      %p42 = scmp.ne.s32.totalorder %s31, %s32
      %p43 = scmp.eq.s32.totalorder %s23, 0
      %p44 = por %p42, %p43
      %p45 = scmp.ne.s32.totalorder %s31, %s32
      %p46 = scmp.eq.s32.totalorder %s24, 1
      %p47 = por %p45, %p46
      %p49 = scmp.ne.s32.totalorder %s32, %s48
      %p50 = scmp.eq.s32.totalorder %s24, 0
      %p51 = por %p49, %p50
      %s52 = ssub.s32 %s18, %s25
      %p53 = scmp.eq.s32.totalorder %s52, 0
      %s55 = sadd.s32 %s54, 1
      %s56 = scalar_select %p53, %s54, %s55
      %p59 = pneg %p53
      %p60 = scmp.eq.s32.totalorder %s18, 1
      %p61 = por %p59, %p60
      %p62 = scmp.ne.s32.totalorder %s54, %s57
      %p63 = scmp.eq.s32.totalorder %s18, 0
      %p64 = por %p62, %p63
      %p65 = scmp.ne.s32.totalorder %s54, %s57
      %p66 = scmp.eq.s32.totalorder %s23, 1
      %p67 = por %p65, %p66
      %p68 = scmp.ne.s32.totalorder %s57, %s58
      %p69 = scmp.eq.s32.totalorder %s23, 0
      %p70 = por %p68, %p69
      %p71 = scmp.ne.s32.totalorder %s57, %s58
      %p72 = scmp.eq.s32.totalorder %s24, 1
      %p73 = por %p71, %p72
      %p75 = scmp.ne.s32.totalorder %s58, %s74
      %p76 = scmp.eq.s32.totalorder %s24, 0
      %p77 = por %p75, %p76
      %s78 = ssub.s32 %s18, %s25
      %p79 = scmp.eq.s32.totalorder %s78, 0
      %s81 = sadd.s32 %s80, 1
      %s82 = scalar_select %p79, %s80, %s81
      %p85 = pneg %p79
      %p86 = scmp.eq.s32.totalorder %s18, 1
      %p87 = por %p85, %p86
      %p88 = scmp.ne.s32.totalorder %s80, %s83
      %p89 = scmp.eq.s32.totalorder %s18, 0
      %p90 = por %p88, %p89
      %p91 = scmp.ne.s32.totalorder %s80, %s83
      %p92 = scmp.eq.s32.totalorder %s23, 1
      %p93 = por %p91, %p92
      %p94 = scmp.ne.s32.totalorder %s83, %s84
      %p95 = scmp.eq.s32.totalorder %s23, 0
      %p96 = por %p94, %p95
      %p97 = scmp.ne.s32.totalorder %s83, %s84
      %p98 = scmp.eq.s32.totalorder %s24, 1
      %p99 = por %p97, %p98
      %p101 = scmp.ne.s32.totalorder %s84, %s100
      %p102 = scmp.eq.s32.totalorder %s24, 0
      %p103 = por %p101, %p102
      %s104 = ssub.s32 %s18, %s25
      %p105 = scmp.eq.s32.totalorder %s104, 0
      %s107 = sadd.s32 %s106, 1
      %s108 = scalar_select %p105, %s106, %s107
      %p111 = pneg %p105
      %p112 = scmp.eq.s32.totalorder %s18, 1
      %p113 = por %p111, %p112
      %p114 = scmp.ne.s32.totalorder %s106, %s109
      %p115 = scmp.eq.s32.totalorder %s18, 0
      %p116 = por %p114, %p115
      %p117 = scmp.ne.s32.totalorder %s106, %s109
      %p118 = scmp.eq.s32.totalorder %s23, 1
      %p119 = por %p117, %p118
      %p120 = scmp.ne.s32.totalorder %s109, %s110
      %p121 = scmp.eq.s32.totalorder %s23, 0
      %p122 = por %p120, %p121
      %p123 = scmp.ne.s32.totalorder %s109, %s110
      %p124 = scmp.eq.s32.totalorder %s24, 1
      %p125 = por %p123, %p124
      %p127 = scmp.ne.s32.totalorder %s110, %s126
      %p128 = scmp.eq.s32.totalorder %s24, 0
      %p129 = por %p127, %p128
      %p130 = scmp.le.s32.totalorder 1, %s18
      %p131 = scmp.lt.s32.totalorder %s18, 3
      %p132 = pnand %p130, %p131
      %p133 = pneg %p132
      // Predicated region
      $region9: #{tpu_custom_call.1} parent=5 // pred_check
        _
      $region10: #{tpu_custom_call.1} parent=5 // pred_check_branch
        %135 = sbr.rel (%p132) target = $region12
      $region11: #{tpu_custom_call.1} parent=5 // pred_region
        %s136 = ssub.s32 %s18, 1
      $region12: #{tpu_custom_call.1} parent=5 // pred_fallthru
        _
      %p137 = scmp.lt.s32.totalorder %s18, 2
      // Predicated region
      $region13: #{tpu_custom_call.1} parent=5 // pred_check
        %p138 = pneg %p137
      $region14: #{tpu_custom_call.1} parent=5 // pred_check_branch
        %140 = sbr.rel (%p138) target = $region16
      $region15: #{tpu_custom_call.1} parent=5 // pred_region
        // Predicated region
        $region17: #{tpu_custom_call.1} parent=15 // pred_check
          %p141 = pneg %p38
        $region18: #{tpu_custom_call.1} parent=15 // pred_check_branch
          %143 = sbr.rel (%p141) target = $region20
        $region19: #{tpu_custom_call.1} parent=15 // pred_region
          %s144 = sand.u32 %s28, 1
          %s145 = scalar_lea.sflag [#allocation3], %s144
          %s146 = sand.u32 %s28, 1
          %s147 = smul.addr %s146, 8
          %s148 = scalar_lea.vmem [#allocation2], %s147
          %s150 = ssub.s32 128, 128
          %151 = vsyncadd %s145, %s150
          %s152 = smul.addr %s18, 128
          %s153 = scalar_lea.hbm %s0, %s152
          %s155 = sshll.u32 %s148, 4
          %s156 = int_to_ptr.vmem [resolvable:$true] %s155
          %158 = dma.hbm_to_vmem [thread:$0]  %s153, 128, %s156, %s145
        $region20: #{tpu_custom_call.1} parent=15 // pred_fallthru
          _
        // Predicated region
        $region21: #{tpu_custom_call.1} parent=15 // pred_check
          %p159 = pneg %p64
        $region22: #{tpu_custom_call.1} parent=15 // pred_check_branch
          %161 = sbr.rel (%p159) target = $region24
        $region23: #{tpu_custom_call.1} parent=15 // pred_region
          %s162 = sand.u32 %s18, 1
          %s163 = scalar_lea.sflag [#allocation6], %s162
          %s164 = sand.u32 %s54, 1
          %s165 = smul.addr %s164, 8
          %s166 = scalar_lea.vmem [#allocation5], %s165
          %s168 = ssub.s32 128, 128
          %169 = vsyncadd %s163, %s168
          %s170 = smul.addr %s18, 128
          %s171 = scalar_lea.hbm %s1, %s170
          %s173 = sshll.u32 %s166, 4
          %s174 = int_to_ptr.vmem [resolvable:$true] %s173
          %176 = dma.hbm_to_vmem [thread:$0]  %s171, 128, %s174, %s163
        $region24: #{tpu_custom_call.1} parent=15 // pred_fallthru
          _
        // Predicated region
        $region25: #{tpu_custom_call.1} parent=15 // pred_check
          %p177 = pneg %p90
        $region26: #{tpu_custom_call.1} parent=15 // pred_check_branch
          %179 = sbr.rel (%p177) target = $region28
        $region27: #{tpu_custom_call.1} parent=15 // pred_region
          %s180 = sand.u32 %s18, 1
          %s181 = scalar_lea.sflag [#allocation6], %s180
          %s182 = sand.u32 %s80, 1
          %s183 = smul.addr %s182, 8
          %s184 = scalar_lea.vmem [#allocation7], %s183
          %s186 = ssub.s32 128, 128
          %187 = vsyncadd %s181, %s186
          %s188 = smul.addr %s18, 128
          %s189 = scalar_lea.hbm %s2, %s188
          %s191 = sshll.u32 %s184, 4
          %s192 = int_to_ptr.vmem [resolvable:$true] %s191
          %194 = dma.hbm_to_vmem [thread:$0]  %s189, 128, %s192, %s181
        $region28: #{tpu_custom_call.1} parent=15 // pred_fallthru
          _
      $region16: #{tpu_custom_call.1} parent=5 // pred_fallthru
        _
      %p195 = scmp.le.s32.totalorder 1, %s18
      %p196 = scmp.lt.s32.totalorder %s18, 3
      %p197 = pnand %p195, %p196
      %p198 = pneg %p197
      // Predicated region
      $region29: #{tpu_custom_call.1} parent=5 // pred_check
        _
      $region30: #{tpu_custom_call.1} parent=5 // pred_check_branch
        %200 = sbr.rel (%p197) target = $region32
      $region31: #{tpu_custom_call.1} parent=5 // pred_region
        %s201 = ssub.s32 %s18, 1
        %s202 = sand.u32 %s31, 1
        %s203 = scalar_lea.sflag [#allocation3], %s202
        %s204 = sand.u32 %s31, 1
        %s205 = smul.addr %s204, 8
        %s206 = scalar_lea.vmem [#allocation2], %s205
        // Predicated region
        $region33: #{tpu_custom_call.1} parent=31 // pred_check
          %p207 = pneg %p44
        $region34: #{tpu_custom_call.1} parent=31 // pred_check_branch
          %209 = sbr.rel (%p207) target = $region36
        $region35: #{tpu_custom_call.1} parent=31 // pred_region
          %210 = dma.done %s203, 128
        $region36: #{tpu_custom_call.1} parent=31 // pred_fallthru
          _
        %s211 = sand.u32 %s23, 1
        %s212 = scalar_lea.sflag [#allocation6], %s211
        %s213 = sand.u32 %s57, 1
        %s214 = smul.addr %s213, 8
        %s215 = scalar_lea.vmem [#allocation5], %s214
        // Predicated region
        $region37: #{tpu_custom_call.1} parent=31 // pred_check
          %p216 = pneg %p70
        $region38: #{tpu_custom_call.1} parent=31 // pred_check_branch
          %218 = sbr.rel (%p216) target = $region40
        $region39: #{tpu_custom_call.1} parent=31 // pred_region
          %219 = dma.done %s212, 128
        $region40: #{tpu_custom_call.1} parent=31 // pred_fallthru
          _
        %s220 = sand.u32 %s23, 1
        %s221 = scalar_lea.sflag [#allocation6], %s220
        %s222 = sand.u32 %s83, 1
        %s223 = smul.addr %s222, 8
        %s224 = scalar_lea.vmem [#allocation7], %s223
        // Predicated region
        $region41: #{tpu_custom_call.1} parent=31 // pred_check
          %p225 = pneg %p96
        $region42: #{tpu_custom_call.1} parent=31 // pred_check_branch
          %227 = sbr.rel (%p225) target = $region44
        $region43: #{tpu_custom_call.1} parent=31 // pred_region
          %228 = dma.done %s221, 128
        $region44: #{tpu_custom_call.1} parent=31 // pred_fallthru
          _
        %s229 = sand.u32 %s31, 1
        %s230 = scalar_lea.sflag [#allocation3], %s229
        %s231 = sand.u32 %s31, 1
        %s232 = smul.addr %s231, 8
        %s233 = scalar_lea.vmem [#allocation2], %s232
        %p234 = pneg %p44
        %p235 = pneg %p41
        %s236 = sand.u32 %s23, 1
        %s237 = scalar_lea.sflag [#allocation6], %s236
        %s238 = sand.u32 %s57, 1
        %s239 = smul.addr %s238, 8
        %s240 = scalar_lea.vmem [#allocation5], %s239
        %p241 = pneg %p70
        %p242 = pneg %p67
        %s243 = sand.u32 %s23, 1
        %s244 = scalar_lea.sflag [#allocation6], %s243
        %s245 = sand.u32 %s83, 1
        %s246 = smul.addr %s245, 8
        %s247 = scalar_lea.vmem [#allocation7], %s246
        %p248 = pneg %p96
        %p249 = pneg %p93
        %p250 = pneg %p122
        %p251 = pneg %p119
        %s252 = sand.u32 %s109, 1
        %s253 = scalar_lea.sflag [#allocation4], %s252
        %s254 = sand.u32 %s109, 1
        %s255 = smul.addr %s254, 8
        %s256 = scalar_lea.vmem [#allocation8], %s255
        %v258 = vld [vmem:[%s206] sm:$0xff]
        %v259 = vmul.f32 %v258, 0.17677669
        %v260 = vpack.c.bf16 %v259, %v259
        %v261 = vld [vmem:[%s215] sm:$0xff]
        %v262 = vpack.c.bf16 %v261, %v261
        %v263 = vld [vmem:[%s224] sm:$0xff]
        %v264 = vpack.c.bf16 %v263, %v263
        %vm265 = vcmask 261120
        %v267 = vsel %vm265, %v260, 0
        %v270 = vsel %vm265, %v262, 0
        %272 = vmatprep.subr.bf16.mxu0 0
        %273 = vmatpush1.bf16.xpose.msra.mxu0 0
        %274 = vmatprep.subr.bf16.mxu0 0
        %275 = vmatpush1.bf16.xpose.msra.mxu0 0
        %276 = vmatprep.subr.bf16.mxu0 0
        %277 = vmatpush1.bf16.xpose.msra.mxu0 0
        %278 = vmatprep.subr.bf16.mxu0 0
        %279 = vmatpush1.bf16.xpose.msra.mxu0 0
        %280 = vmatprep.subr.bf16.mxu0 0
        %281 = vmatpush1.bf16.xpose.msra.mxu0 0
        %282 = vmatprep.subr.bf16.mxu0 0
        %283 = vmatpush1.bf16.xpose.msra.mxu0 0
        %284 = vmatprep.subr.bf16.mxu0 0
        %285 = vmatpush1.bf16.xpose.msra.mxu0 0
        %286 = vmatprep.subr.bf16.mxu0 0
        %287 = vmatpush1.bf16.xpose.msra.mxu0 %v270
        %288 = vmatprep.subr.bf16.mxu0 0
        %289 = vmatpush2.bf16.xpose.msra.mxu0 0
        %290 = vmatprep.subr.bf16.mxu0 0
        %291 = vmatpush2.bf16.xpose.msra.mxu0 0
        %292 = vmatprep.subr.bf16.mxu0 0
        %293 = vmatpush2.bf16.xpose.msra.mxu0 0
        %294 = vmatprep.subr.bf16.mxu0 0
        %295 = vmatpush2.bf16.xpose.msra.mxu0 0
        %296 = vmatprep.subr.bf16.mxu0 0
        %297 = vmatpush2.bf16.xpose.msra.mxu0 0
        %298 = vmatprep.subr.bf16.mxu0 0
        %299 = vmatpush2.bf16.xpose.msra.mxu0 0
        %300 = vmatprep.subr.bf16.mxu0 0
        %301 = vmatpush2.bf16.xpose.msra.mxu0 0
        %302 = vmatprep.subr.bf16.mxu0 0
        %303 = vmatpush2.bf16.xpose.msra.mxu0 0
        %304 = vmatprep.mubr.bf16.mxu0 0
        %305 = vmatmul.mubr.bf16.gmra.mxu0 %v267
        %v306 = vpop.f32.mrf.mxu0
        %v307 = vadd.f32 0.0, %v306
        %v308 = vpop.f32.mrf.mxu0
        %v309 = vpop.f32.mrf.mxu0
        %v310 = vpop.f32.mrf.mxu0
        %311 = vdwg.mxu0
        %vm312 = vcmask 64512
        %v313 = vsel %vm312, %v307, -inf
        %314 = vmax.xlane.f32.xlu0 %v313
        %v315 = vpop.xlane.xlu0 %314
        %v316 = vsub.f32 %v307, %v315
        %v317 = vmul.f32 %v316, 1.442695
        %v318 = vpow.pop %v317
        %v319 = vsel %vm312, %v318, 0.0
        %320 = vadd.xlane.f32.xlu0 %v319
        %v321 = vpop.xlane.xlu0 %320
        %v322 = vpack.c.bf16 %v318, %v318
        %v324 = vsel %vm312, %v322, 0
        %vm326 = vcmask 1043456
        %v328 = vsel %vm326, %v264, 0
        %330 = vmatprep.subr.bf16.mxu0 0
        %331 = vmatpush1.bf16.msra.mxu0 0
        %332 = vmatprep.subr.bf16.mxu0 0
        %333 = vmatpush1.bf16.msra.mxu0 0
        %334 = vmatprep.subr.bf16.mxu0 0
        %335 = vmatpush1.bf16.msra.mxu0 0
        %336 = vmatprep.subr.bf16.mxu0 0
        %337 = vmatpush1.bf16.msra.mxu0 0
        %338 = vmatprep.subr.bf16.mxu0 0
        %339 = vmatpush1.bf16.msra.mxu0 0
        %340 = vmatprep.subr.bf16.mxu0 0
        %341 = vmatpush1.bf16.msra.mxu0 0
        %342 = vmatprep.subr.bf16.mxu0 0
        %343 = vmatpush1.bf16.msra.mxu0 0
        %344 = vmatprep.subr.bf16.mxu0 0
        %345 = vmatpush1.bf16.msra.mxu0 %v328
        %346 = vmatprep.subr.bf16.mxu0 0
        %347 = vmatpush2.bf16.msra.mxu0 0
        %348 = vmatprep.subr.bf16.mxu0 0
        %349 = vmatpush2.bf16.msra.mxu0 0
        %350 = vmatprep.subr.bf16.mxu0 0
        %351 = vmatpush2.bf16.msra.mxu0 0
        %352 = vmatprep.subr.bf16.mxu0 0
        %353 = vmatpush2.bf16.msra.mxu0 0
        %354 = vmatprep.subr.bf16.mxu0 0
        %355 = vmatpush2.bf16.msra.mxu0 0
        %356 = vmatprep.subr.bf16.mxu0 0
        %357 = vmatpush2.bf16.msra.mxu0 0
        %358 = vmatprep.subr.bf16.mxu0 0
        %359 = vmatpush2.bf16.msra.mxu0 0
        %360 = vmatprep.subr.bf16.mxu0 0
        %361 = vmatpush2.bf16.msra.mxu0 0
        %362 = vmatprep.mubr.bf16.mxu0 0
        %363 = vmatmul.mubr.bf16.gmra.mxu0 %v324
        %v364 = vpop.f32.mrf.mxu0
        %v365 = vadd.f32 0.0, %v364
        %v366 = vpop.f32.mrf.mxu0
        %v367 = vpop.f32.mrf.mxu0
        %v368 = vpop.f32.mrf.mxu0
        %369 = vdwg.mxu0
        %v370 = vrcp.pop %v321
        %v371 = vmul.f32 %v365, %v370
        %372 = vst.msk [vmem:[%s256] sm:$0xff] %vm265, %v371
        %s373 = sand.u32 %s109, 1
        %s374 = scalar_lea.sflag [#allocation4], %s373
        %s375 = sand.u32 %s109, 1
        %s376 = smul.addr %s375, 8
        %s377 = scalar_lea.vmem [#allocation8], %s376
        // Predicated region
        $region45: #{tpu_custom_call.1} parent=31 // pred_check
          %p378 = pneg %p119
        $region46: #{tpu_custom_call.1} parent=31 // pred_check_branch
          %380 = sbr.rel (%p378) target = $region48
        $region47: #{tpu_custom_call.1} parent=31 // pred_region
          %s382 = ssub.s32 128, 128
          %383 = vsyncadd %s374, %s382
          %s384 = smul.addr %s23, 128
          %s385 = scalar_lea.hbm %s3, %s384
          %s387 = sshll.u32 %s377, 4
          %s388 = int_to_ptr.vmem [resolvable:$true] %s387
          %390 = dma.vmem_to_hbm [thread:$0]  %s388, 128, %s385, %s374
        $region48: #{tpu_custom_call.1} parent=31 // pred_fallthru
          _
      $region32: #{tpu_custom_call.1} parent=5 // pred_fallthru
        _
      %p391 = scmp.le.s32.totalorder 2, %s18
      // Predicated region
      $region49: #{tpu_custom_call.1} parent=5 // pred_check
        %p392 = pneg %p391
      $region50: #{tpu_custom_call.1} parent=5 // pred_check_branch
        %394 = sbr.rel (%p392) target = $region52
      $region51: #{tpu_custom_call.1} parent=5 // pred_region
        %s395 = ssub.s32 %s18, 2
        // Predicated region
        $region53: #{tpu_custom_call.1} parent=51 // pred_check
          %p396 = pneg %p125
        $region54: #{tpu_custom_call.1} parent=51 // pred_check_branch
          %398 = sbr.rel (%p396) target = $region56
        $region55: #{tpu_custom_call.1} parent=51 // pred_region
          %s399 = sand.u32 %s110, 1
          %s400 = scalar_lea.sflag [#allocation4], %s399
          %s401 = sand.u32 %s110, 1
          %s402 = smul.addr %s401, 8
          %s403 = scalar_lea.vmem [#allocation8], %s402
          %404 = dma.done %s400, 128
        $region56: #{tpu_custom_call.1} parent=51 // pred_fallthru
          _
      $region52: #{tpu_custom_call.1} parent=5 // pred_fallthru
        _
    $region6: #{tpu_custom_call.1} parent=1 // loop_footer
      %s22 = sadd.s32 1, %s18
    $region7: #{tpu_custom_call.1} parent=1 // loop_footer_branch
      %17 = sbr.rel target = $region3
    $region8: #{tpu_custom_call.1} parent=1 // loop_exit
      _
    %405 = vsyncpa [#allocation3], 1
    %s406 = scalar_lea.sflag [#allocation3], 1
    %407 = vsyncpa %s406, 1
    %408 = vsyncpa [#allocation6], 1
    %s409 = scalar_lea.sflag [#allocation6], 1
    %410 = vsyncpa %s409, 1
    %411 = vsyncpa [#allocation4], 1
    %s412 = scalar_lea.sflag [#allocation4], 1
    %413 = vsyncpa %s412, 1

</llo_original>
